<compile_context>
chip_gen: v5e
topology: v5e:2x2
jax: 0.10.0
libtpu: 0.0.40
codegen_flags: <defaults>
</compile_context>

<pallas_src>
import functools

import jax
import jax.numpy as jnp
from jax.experimental import pallas as pl
from jax.experimental.pallas import tpu as pltpu

LANE = 128
MAX_TILE_ROWS = 8192            # (8192, 128) f32 tile = 4 MiB per input per buffer
VMEM_LIMIT_BYTES = 48 * 1024 * 1024


def _focal_loss_kernel(x_ref, t_ref, loss_out_ref, w_out_ref, acc_ref, *,
                       gamma, rows_valid, tile_rows, tiles_per_core, needs_mask):
    p = pl.program_id(0)          # parallel axis (TensorCore split)
    i = pl.program_id(1)          # arbitrary (reduction) axis

    @pl.when(i == 0)
    def _init():
        acc_ref[0] = 0.0          # per-core running sum(loss)
        acc_ref[1] = 0.0          # per-core running sum(avg_w)

    x = x_ref[...].astype(jnp.float32)
    t = t_ref[...].astype(jnp.float32)

    # Shared transcendentals for both log-sigmoids (1 exp + 1 log1p).
    log_term = jnp.log1p(jnp.exp(-jnp.abs(x)))       # log(1 + exp(-|x|))
    pos_log_sig = jnp.minimum(x, 0.0) - log_term     # log(sigmoid(x))
    neg_log_sig = pos_log_sig - x                    # log(1 - sigmoid(x))  (exact)

    if gamma == 2.0:
        prob = jnp.exp(pos_log_sig)                  # sigmoid(x) (1 exp)
        one_m_prob = 1.0 - prob
        pos_w = one_m_prob * one_m_prob              # (1-p)^2  -- pure VPU
        neg_w = prob * prob                          # p^2      -- pure VPU
    else:
        pos_w = jnp.exp(gamma * neg_log_sig)         # (1-p)^gamma
        neg_w = jnp.exp(gamma * pos_log_sig)         # p^gamma

    wp = t * pos_w
    wn = (1.0 - t) * neg_w
    loss = -(wp * pos_log_sig + wn * neg_log_sig)
    avg_w = wp + wn

    if needs_mask:
        # Valid rows remaining at the start of this (global) tile; <= 0 for phantom
        # tiles introduced by the TensorCore split. int32-safe (row counts, not elems).
        g = p * tiles_per_core + i
        rem = rows_valid - g * tile_rows

        @pl.when(rem >= tile_rows)
        def _full_tile():                            # hot path: no mask ops
            acc_ref[0] += jnp.sum(loss)
            acc_ref[1] += jnp.sum(avg_w)

        @pl.when(rem < tile_rows)
        def _ragged_tile():                          # cold path: only tiles past the end
            row_idx = jax.lax.broadcasted_iota(jnp.int32, loss.shape, 0)
            valid = row_idx < rem
            acc_ref[0] += jnp.sum(jnp.where(valid, loss, 0.0))
            acc_ref[1] += jnp.sum(jnp.where(valid, avg_w, 0.0))
    else:
        acc_ref[0] += jnp.sum(loss)
        acc_ref[1] += jnp.sum(avg_w)

    @pl.when(i == pl.num_programs(1) - 1)
    def _finalize():
        # Broadcast the per-core partial sums across a full (1,8,128) lane-dense block.
        loss_out_ref[...] = jnp.full(loss_out_ref.shape, acc_ref[0], dtype=jnp.float32)
        w_out_ref[...] = jnp.full(w_out_ref.shape, acc_ref[1], dtype=jnp.float32)


def _focal_terms_jax(x, t, gamma):
    """Plain-JAX (sum_loss, sum_avg_w) for the ragged (<128 elem) tail / tiny inputs."""
    x = x.astype(jnp.float32)
    t = t.astype(jnp.float32)
    log_term = jnp.log1p(jnp.exp(-jnp.abs(x)))
    pos_log_sig = jnp.minimum(x, 0.0) - log_term
    neg_log_sig = pos_log_sig - x
    prob = jnp.exp(pos_log_sig)
    pos_w = jnp.power(1.0 - prob, gamma)
    neg_w = jnp.power(prob, gamma)
    wp = t * pos_w
    wn = (1.0 - t) * neg_w
    loss = -(wp * pos_log_sig + wn * neg_log_sig)
    avg_w = wp + wn
    return jnp.sum(loss), jnp.sum(avg_w)


def focal_loss(x, target, gamma=2.0):
    """Pallas TPU implementation of FocalLoss.forward(input, target) -> scalar."""
    assert x.shape == target.shape
    gamma = float(gamma)
    n = x.size
    rows = n // LANE
    tail = n - rows * LANE

    # Keep native dtype for the DMA; cast to f32 inside the kernel.
    xf = x.reshape(-1)
    tf = target.reshape(-1)

    if rows == 0:  # tiny input (< 128 elements): pure JAX
        loss_sum, w_sum = _focal_terms_jax(xf, tf, gamma)
        return loss_sum / w_sum

    if tail:
        x_main = xf[: rows * LANE]
        t_main = tf[: rows * LANE]
    else:  # lane-aligned: reshape is free, zero extra HBM passes
        x_main, t_main = xf, tf
    x2 = x_main.reshape(rows, LANE)
    t2 = t_main.reshape(rows, LANE)

    tile_rows = rows if rows <= MAX_TILE_ROWS else MAX_TILE_ROWS
    total_tiles = pl.cdiv(rows, tile_rows)

    # Split the reduction across both TensorCores (v7x) once there is enough work;
    # on 1-TC chips the parallel axis is just a 2-iteration outer loop.
    num_par = 2 if total_tiles >= 8 else 1
    tiles_per_core = pl.cdiv(total_tiles, num_par)
    needs_mask = (rows % tile_rows != 0) or (total_tiles % num_par != 0)

    def in_index_map(p, i):
        # Clamp so phantom tiles (from an uneven core split) re-read the last tile;
        # the in-kernel residual mask zeroes their contribution.
        return (jnp.minimum(p * tiles_per_core + i, total_tiles - 1), 0)

    kernel = functools.partial(
        _focal_loss_kernel,
        gamma=gamma,
        rows_valid=rows,
        tile_rows=tile_rows,
        tiles_per_core=tiles_per_core,
        needs_mask=needs_mask,
    )

    loss_part, w_part = pl.pallas_call(
        kernel,
        out_shape=(
            jax.ShapeDtypeStruct((num_par, 8, 128), jnp.float32),
            jax.ShapeDtypeStruct((num_par, 8, 128), jnp.float32),
        ),
        grid=(num_par, tiles_per_core),
        in_specs=[
            pl.BlockSpec((tile_rows, LANE), in_index_map),
            pl.BlockSpec((tile_rows, LANE), in_index_map),
        ],
        out_specs=(
            pl.BlockSpec((1, 8, 128), lambda p, i: (p, 0, 0)),
            pl.BlockSpec((1, 8, 128), lambda p, i: (p, 0, 0)),
        ),
        scratch_shapes=[pltpu.SMEM((2,), jnp.float32)],
        compiler_params=pltpu.CompilerParams(
            dimension_semantics=("parallel", "arbitrary"),
            vmem_limit_bytes=VMEM_LIMIT_BYTES,
        ),
    )(x2, t2)

    loss_sum = jnp.sum(loss_part[:, 0, 0])
    w_sum = jnp.sum(w_part[:, 0, 0])

    if tail:  # < 128 leftover elements: fold in with plain JAX
        tl, tw = _focal_terms_jax(xf[rows * LANE:], tf[rows * LANE:], gamma)
        loss_sum = loss_sum + tl
        w_sum = w_sum + tw

    # mean(loss / mean(avg_w)) == sum(loss) / sum(avg_w)  (same element count)
    return loss_sum / w_sum


def focal_loss_ref(x, target, gamma=2.0):
    """Pure-JAX reference mirroring the PyTorch code line by line."""
    x = x.astype(jnp.float32)
    t = target.astype(jnp.float32)
    log_term = jnp.log(1.0 + jnp.exp(-jnp.abs(x)))
    pos_log_sig = jnp.minimum(x, 0.0) - log_term   # torch.clamp(x, max=0) - log_term
    neg_log_sig = jnp.minimum(-x, 0.0) - log_term  # torch.clamp(-x, max=0) - log_term
    prob = jax.nn.sigmoid(x)
    pos_w = jnp.power(1.0 - prob, gamma)
    neg_w = jnp.power(prob, gamma)
    loss = -(t * pos_w * pos_log_sig + (1.0 - t) * neg_w * neg_log_sig)
    avg_w = t * pos_w + (1.0 - t) * neg_w
    loss = loss / jnp.mean(avg_w)
    return jnp.mean(loss)


if __name__ == "__main__":
    key = jax.random.PRNGKey(0)
    k1, k2 = jax.random.split(key)

    # SiamFC-style response map: (B, C, H, W) in NCHW; target is a binary label map.
    B, C, H, W = 2, 4, 16, 16
    x = jax.random.normal(k1, (B, C, H, W), dtype=jnp.float32) * 3.0
    target = (jax.random.uniform(k2, (B, C, H, W)) > 0.7).astype(jnp.float32)

    out = focal_loss(x, target, gamma=2.0)
    out = jax.block_until_ready(out)

    ref = focal_loss_ref(x, target, gamma=2.0)
    assert jnp.allclose(out, ref, rtol=1e-5, atol=1e-5), (out, ref)

    print("KERNEL_OK")
</pallas_src>

<mosaic_0001>
module attributes {stable_mosaic.version = 11 : i64} {
  func.func @_focal_loss_kernel(%arg0: i32, %arg1: i32, %arg2: memref<16x128xf32, #tpu.memory_space<vmem>>, %arg3: memref<16x128xf32, #tpu.memory_space<vmem>>, %arg4: memref<1x8x128xf32, #tpu.memory_space<vmem>>, %arg5: memref<1x8x128xf32, #tpu.memory_space<vmem>>, %arg6: memref<2xf32, #tpu.memory_space<smem>>) attributes {dimension_semantics = [#tpu.dimension_semantics<parallel>, #tpu.dimension_semantics<arbitrary>], iteration_bounds = array<i64: 1, 1>, scalar_prefetch = 0 : i64, scratch_operands = 1 : i64, tpu.core_type = #tpu.core_type<tc>, window_params = [{transform_indices = @transform_0, window_bounds = array<i64: 16, 128>}, {transform_indices = @transform_1, window_bounds = array<i64: 16, 128>}, {transform_indices = @transform_2, window_bounds = array<i64: 1, 8, 128>}, {transform_indices = @transform_3, window_bounds = array<i64: 1, 8, 128>}]} {
    %c0_i32 = arith.constant 0 : i32
    %0 = arith.cmpi eq, %arg1, %c0_i32 : i32
    %1 = arith.extui %0 : i1 to i32
    %c0_i32_0 = arith.constant 0 : i32
    %2 = arith.cmpi ne, %1, %c0_i32_0 : i32
    scf.if %2 {
      %cst_15 = arith.constant 0.000000e+00 : f32
      %c0_16 = arith.constant 0 : index
      %46 = memref.load %arg6[%c0_16] : memref<2xf32, #tpu.memory_space<smem>>
      memref.store %cst_15, %arg6[%c0_16] : memref<2xf32, #tpu.memory_space<smem>>
      %cst_17 = arith.constant 0.000000e+00 : f32
      %c1_18 = arith.constant 1 : index
      %47 = memref.load %arg6[%c1_18] : memref<2xf32, #tpu.memory_space<smem>>
      memref.store %cst_17, %arg6[%c1_18] : memref<2xf32, #tpu.memory_space<smem>>
    } else {
    }
    %c0 = arith.constant 0 : index
    %c0_1 = arith.constant 0 : index
    %3 = vector.load %arg2[%c0, %c0_1] : memref<16x128xf32, #tpu.memory_space<vmem>>, vector<16x128xf32>
    %c0_2 = arith.constant 0 : index
    %c0_3 = arith.constant 0 : index
    %4 = vector.load %arg3[%c0_2, %c0_3] : memref<16x128xf32, #tpu.memory_space<vmem>>, vector<16x128xf32>
    %5 = math.absf %3 : vector<16x128xf32>
    %cst = arith.constant 0.000000e+00 : f32
    %6 = vector.broadcast %cst : f32 to vector<16x128xf32>
    %7 = arith.subf %6, %5 : vector<16x128xf32>
    %8 = math.exp %7 : vector<16x128xf32>
    %9 = math.log1p %8 : vector<16x128xf32>
    %cst_4 = arith.constant 0.000000e+00 : f32
    %10 = vector.broadcast %cst_4 : f32 to vector<16x128xf32>
    %11 = arith.minimumf %3, %10 : vector<16x128xf32>
    %12 = arith.subf %11, %9 : vector<16x128xf32>
    %13 = arith.subf %12, %3 : vector<16x128xf32>
    %14 = math.exp %12 : vector<16x128xf32>
    %cst_5 = arith.constant 1.000000e+00 : f32
    %15 = vector.broadcast %cst_5 : f32 to vector<16x128xf32>
    %16 = arith.subf %15, %14 : vector<16x128xf32>
    %17 = arith.mulf %16, %16 : vector<16x128xf32>
    %18 = arith.mulf %14, %14 : vector<16x128xf32>
    %19 = arith.mulf %4, %17 : vector<16x128xf32>
    %cst_6 = arith.constant 1.000000e+00 : f32
    %20 = vector.broadcast %cst_6 : f32 to vector<16x128xf32>
    %21 = arith.subf %20, %4 : vector<16x128xf32>
    %22 = arith.mulf %21, %18 : vector<16x128xf32>
    %23 = arith.mulf %19, %12 : vector<16x128xf32>
    %24 = arith.mulf %22, %13 : vector<16x128xf32>
    %25 = arith.addf %23, %24 : vector<16x128xf32>
    %cst_7 = arith.constant 0.000000e+00 : f32
    %26 = vector.broadcast %cst_7 : f32 to vector<16x128xf32>
    %27 = arith.subf %26, %25 : vector<16x128xf32>
    %28 = arith.addf %19, %22 : vector<16x128xf32>
    %c0_8 = arith.constant 0 : index
    %29 = memref.load %arg6[%c0_8] : memref<2xf32, #tpu.memory_space<smem>>
    %30 = vector.shape_cast %27 : vector<16x128xf32> to vector<1x16x128xf32>
    %cst_9 = arith.constant dense<0.000000e+00> : vector<1xf32>
    %31 = vector.multi_reduction <add>, %30, %cst_9 [1, 2] : vector<1x16x128xf32> to vector<1xf32>
    %32 = vector.shape_cast %31 : vector<1xf32> to vector<1x1x1xf32>
    %33 = vector.extract %32[0, 0, 0] : f32 from vector<1x1x1xf32>
    %34 = arith.addf %29, %33 : f32
    %c0_10 = arith.constant 0 : index
    %35 = memref.load %arg6[%c0_10] : memref<2xf32, #tpu.memory_space<smem>>
    memref.store %34, %arg6[%c0_10] : memref<2xf32, #tpu.memory_space<smem>>
    %c1 = arith.constant 1 : index
    %36 = memref.load %arg6[%c1] : memref<2xf32, #tpu.memory_space<smem>>
    %37 = vector.shape_cast %28 : vector<16x128xf32> to vector<1x16x128xf32>
    %cst_11 = arith.constant dense<0.000000e+00> : vector<1xf32>
    %38 = vector.multi_reduction <add>, %37, %cst_11 [1, 2] : vector<1x16x128xf32> to vector<1xf32>
    %39 = vector.shape_cast %38 : vector<1xf32> to vector<1x1x1xf32>
    %40 = vector.extract %39[0, 0, 0] : f32 from vector<1x1x1xf32>
    %41 = arith.addf %36, %40 : f32
    %c1_12 = arith.constant 1 : index
    %42 = memref.load %arg6[%c1_12] : memref<2xf32, #tpu.memory_space<smem>>
    memref.store %41, %arg6[%c1_12] : memref<2xf32, #tpu.memory_space<smem>>
    %c0_i32_13 = arith.constant 0 : i32
    %43 = arith.cmpi eq, %arg1, %c0_i32_13 : i32
    %44 = arith.extui %43 : i1 to i32
    %c0_i32_14 = arith.constant 0 : i32
    %45 = arith.cmpi ne, %44, %c0_i32_14 : i32
    scf.if %45 {
      %c0_15 = arith.constant 0 : index
      %46 = memref.load %arg6[%c0_15] : memref<2xf32, #tpu.memory_space<smem>>
      %47 = vector.broadcast %46 : f32 to vector<1x8x128xf32>
      %c0_16 = arith.constant 0 : index
      %c0_17 = arith.constant 0 : index
      %c0_18 = arith.constant 0 : index
      %48 = vector.load %arg4[%c0_16, %c0_17, %c0_18] : memref<1x8x128xf32, #tpu.memory_space<vmem>>, vector<1x8x128xf32>
      tpu.vector_store %arg4[%c0_16, %c0_17, %c0_18], %47 {strides = array<i32>} : memref<1x8x128xf32, #tpu.memory_space<vmem>>, vector<1x8x128xf32>,
      %c1_19 = arith.constant 1 : index
      %49 = memref.load %arg6[%c1_19] : memref<2xf32, #tpu.memory_space<smem>>
      %50 = vector.broadcast %49 : f32 to vector<1x8x128xf32>
      %c0_20 = arith.constant 0 : index
      %c0_21 = arith.constant 0 : index
      %c0_22 = arith.constant 0 : index
      %51 = vector.load %arg5[%c0_20, %c0_21, %c0_22] : memref<1x8x128xf32, #tpu.memory_space<vmem>>, vector<1x8x128xf32>
      tpu.vector_store %arg5[%c0_20, %c0_21, %c0_22], %50 {strides = array<i32>} : memref<1x8x128xf32, #tpu.memory_space<vmem>>, vector<1x8x128xf32>,
    } else {
    }
    return
  }
  func.func @transform_0(%arg0: i32, %arg1: i32) -> (i32, i32) {
    %c1_i32 = arith.constant 1 : i32
    %0 = arith.muli %arg0, %c1_i32 : i32
    %1 = arith.addi %0, %arg1 : i32
    %c0_i32 = arith.constant 0 : i32
    %2 = arith.minsi %1, %c0_i32 : i32
    %c0_i32_0 = arith.constant 0 : i32
    %c0_i32_1 = arith.constant 0 : i32
    return %2, %c0_i32_0 : i32, i32
  }
  func.func @transform_1(%arg0: i32, %arg1: i32) -> (i32, i32) {
    %c1_i32 = arith.constant 1 : i32
    %0 = arith.muli %arg0, %c1_i32 : i32
    %1 = arith.addi %0, %arg1 : i32
    %c0_i32 = arith.constant 0 : i32
    %2 = arith.minsi %1, %c0_i32 : i32
    %c0_i32_0 = arith.constant 0 : i32
    %c0_i32_1 = arith.constant 0 : i32
    return %2, %c0_i32_0 : i32, i32
  }
  func.func @transform_2(%arg0: i32, %arg1: i32) -> (i32, i32, i32) {
    %c0_i32 = arith.constant 0 : i32
    %c0_i32_0 = arith.constant 0 : i32
    %c0_i32_1 = arith.constant 0 : i32
    return %arg0, %c0_i32, %c0_i32_0 : i32, i32, i32
  }
  func.func @transform_3(%arg0: i32, %arg1: i32) -> (i32, i32, i32) {
    %c0_i32 = arith.constant 0 : i32
    %c0_i32_0 = arith.constant 0 : i32
    %c0_i32_1 = arith.constant 0 : i32
    return %arg0, %c0_i32, %c0_i32_0 : i32, i32, i32
  }
}

</mosaic_0001>

<llo_original>
// kernel: tpu_custom_call.1
$region0: #{tpu_custom_call.1}
  #allocation0 [shape = 'u32[]', space=smem, size = 0x4, offset = 0x4, fixed_abs, tag = 'smem constant byte address 0x4 - core index']
  #allocation1 [shape = 'u32[72,128]{1,0:T(1,128)}', space=vmem, size = 0x9000, scoped, tag = 'internal scratch']
  #allocation2 [shape = 'f32[2]{0:T(128)}', space=smem, size = 0x200, scoped, tag = 'scratch operand']
  %s0 = inlined_call_operand.hbm [shape: f32[16,128], index: 0, kind: input, shape index: {}]
  %s1 = inlined_call_operand.hbm [shape: f32[16,128], index: 1, kind: input, shape index: {}]
  %s2 = inlined_call_operand.hbm [shape: f32[1,8,128], index: 2, kind: output, shape index: {0}]
  %s3 = inlined_call_operand.hbm [shape: f32[1,8,128], index: 3, kind: output, shape index: {1}]
  %4 = xla_tuple %s2, %s3
  %s5 = sld [smem:[#allocation0]]
  $region42: #{tpu_custom_call.1} parent=0
    _
  %s7 = ssub.s32 1, %s5
  %s8 = scalar_select 0, %s7, %s5
  $region1: #{tpu_custom_call.1} parent=0
    #allocation3 [shape = 'u8[8192]{0}', space=vmem, size = 0x2000, scoped, tag = 'input window, operand 0, single buffered']
    #allocation4 [shape = 's32[1]{0}', space=sflag, size = 0x4, scoped, tag = 'scoped memory for tpu_custom_call.1']
    #allocation5 [shape = 's32[1]{0}', space=sflag, size = 0x4, scoped, tag = 'scoped memory for tpu_custom_call.1']
    #allocation6 [shape = 'u8[8192]{0}', space=vmem, size = 0x2000, scoped, tag = 'input window, operand 1, single buffered']
    #allocation7 [shape = 's32[1]{0}', space=sflag, size = 0x4, scoped, tag = 'scoped memory for tpu_custom_call.1']
    #allocation8 [shape = 'u8[4096]{0}', space=vmem, size = 0x1000, scoped, tag = 'output window, operand 0, single buffered']
    #allocation9 [shape = 'u8[4096]{0}', space=vmem, size = 0x1000, scoped, tag = 'output window, operand 1, single buffered']
    #allocation10 [shape = 's32[1]{0}', space=sflag, size = 0x4, scoped, tag = 'scoped memory for tpu_custom_call.1']
    %9 = vsyncpa [#allocation4], 0
    %10 = vsyncpa [#allocation7], 0
    %11 = vsyncpa [#allocation5], 0
    %12 = vsyncpa [#allocation10], 0
    // Predicated region
    $region2: #{tpu_custom_call.1} parent=1 // pred_check
      _
    $region3: #{tpu_custom_call.1} parent=1 // pred_check_branch
      %14 = sbr.rel (0) target = $region5
    $region4: #{tpu_custom_call.1} parent=1 // pred_region
      %s15 = sadd.s32 0, 0
      %p16 = scmp.lt.s32.totalorder %s15, 0
      %s17 = scalar_select %p16, %s15, 0
      %s18 = smul.u32 2, %s17
      %20 = vsyncadd [#allocation4], 0
      %s21 = smul.addr %s18, 8
      %s22 = scalar_lea.hbm %s0, %s21
      %s23 = sshll.u32 %s22, 4
      %s24 = int_to_ptr.hbm [resolvable:$true] %s23
      %s25 = sshll.u32 [#allocation3], 4
      %s26 = int_to_ptr.vmem [resolvable:$true] %s25
      %31 = dma.hbm_to_vmem [thread:$0]  %s24, 256, %s26, [#allocation4], 128, 128, 8
    $region5: #{tpu_custom_call.1} parent=1 // pred_fallthru
      _
    // Predicated region
    $region6: #{tpu_custom_call.1} parent=1 // pred_check
      _
    $region7: #{tpu_custom_call.1} parent=1 // pred_check_branch
      %33 = sbr.rel (0) target = $region9
    $region8: #{tpu_custom_call.1} parent=1 // pred_region
      %s34 = sadd.s32 0, 0
      %p35 = scmp.lt.s32.totalorder %s34, 0
      %s36 = scalar_select %p35, %s34, 0
      %s37 = smul.u32 2, %s36
      %39 = vsyncadd [#allocation7], 0
      %s40 = smul.addr %s37, 8
      %s41 = scalar_lea.hbm %s1, %s40
      %s42 = sshll.u32 %s41, 4
      %s43 = int_to_ptr.hbm [resolvable:$true] %s42
      %s44 = sshll.u32 [#allocation6], 4
      %s45 = int_to_ptr.vmem [resolvable:$true] %s44
      %50 = dma.hbm_to_vmem [thread:$0]  %s43, 256, %s45, [#allocation7], 128, 128, 8
    $region9: #{tpu_custom_call.1} parent=1 // pred_fallthru
      _
    // Predicated region
    $region10: #{tpu_custom_call.1} parent=1 // pred_check
      _
    $region11: #{tpu_custom_call.1} parent=1 // pred_check_branch
      %52 = sbr.rel (0) target = $region13
    $region12: #{tpu_custom_call.1} parent=1 // pred_region
      %54 = dma.done [#allocation4], 256
    $region13: #{tpu_custom_call.1} parent=1 // pred_fallthru
      _
    // Predicated region
    $region14: #{tpu_custom_call.1} parent=1 // pred_check
      _
    $region15: #{tpu_custom_call.1} parent=1 // pred_check_branch
      %56 = sbr.rel (0) target = $region17
    $region16: #{tpu_custom_call.1} parent=1 // pred_region
      %58 = dma.done [#allocation7], 256
    $region17: #{tpu_custom_call.1} parent=1 // pred_fallthru
      _
    %s59 = sadd.s32 0, 0
    %p60 = scmp.lt.s32.totalorder %s59, 0
    %s61 = scalar_select %p60, %s59, 0
    %s62 = smul.u32 2, %s61
    %s63 = sadd.s32 0, 0
    %p64 = scmp.lt.s32.totalorder %s63, 0
    %s65 = scalar_select %p64, %s63, 0
    %s66 = smul.u32 2, %s65
    %p67 = scmp.eq.s32.totalorder 0, 0
    // Predicated region
    $region18: #{tpu_custom_call.1} parent=1 // pred_check
      %p68 = pneg %p67
    $region19: #{tpu_custom_call.1} parent=1 // pred_check_branch
      %70 = sbr.rel (%p68) target = $region21
    $region20: #{tpu_custom_call.1} parent=1 // pred_region
      %s71 = scalar_lea.smem [#allocation2], 0
      %72 = sst [smem:[%s71]] 0.0
      %s73 = scalar_lea.smem [#allocation2], 1
      %74 = sst [smem:[%s73]] 0.0
    $region21: #{tpu_custom_call.1} parent=1 // pred_fallthru
      _
    %v75 = vld [vmem:[#allocation3] sm:$0xff]
    %v76 = vld [vmem:[#allocation3 + $0x8] sm:$0xff]
    %v77 = vld [vmem:[#allocation6] sm:$0xff]
    %v78 = vld [vmem:[#allocation6 + $0x8] sm:$0xff]
    %v79 = vand.u32 2147483647, %v75
    %v80 = vand.u32 2147483647, %v76
    %v81 = vsub.f32 0.0, %v79
    %v82 = vsub.f32 0.0, %v80
    %v83 = vmul.f32 %v81, 1.442695
    %v84 = vpow.pop %v83
    %v85 = vmul.f32 %v82, 1.442695
    %v86 = vpow.pop %v85
    %v87 = vadd.f32 %v84, 1.0
    %v88 = vlog2.pop %v87
    %v89 = vmul.f32 %v88, 0.6931472
    %v90 = vmul.f32 -0.5, %v84
    %v91 = vadd.f32 %v90, 1.0
    %v92 = vmul.f32 %v91, %v84
    %v93 = vand.u32 2147483647, %v84
    %vm94 = vcmp.lt.f32.partialorder %v93, 0.0004427343
    %v95 = vsel %vm94, %v92, %v89
    %v96 = vadd.f32 %v86, 1.0
    %v97 = vlog2.pop %v96
    %v98 = vmul.f32 %v97, 0.6931472
    %v99 = vmul.f32 -0.5, %v86
    %v100 = vadd.f32 %v99, 1.0
    %v101 = vmul.f32 %v100, %v86
    %v102 = vand.u32 2147483647, %v86
    %vm103 = vcmp.lt.f32.partialorder %v102, 0.0004427343
    %v104 = vsel %vm103, %v101, %v98
    %v105 = vmin.f32 %v75, 0.0
    %v106 = vmin.f32 %v76, 0.0
    %v107 = vsub.f32 %v105, %v95
    %v108 = vsub.f32 %v106, %v104
    %v109 = vsub.f32 %v107, %v75
    %v110 = vsub.f32 %v108, %v76
    %v111 = vmul.f32 %v107, 1.442695
    %v112 = vpow.pop %v111
    %v113 = vmul.f32 %v108, 1.442695
    %v114 = vpow.pop %v113
    %v115 = vsub.f32 1.0, %v112
    %v116 = vsub.f32 1.0, %v114
    %v117 = vmul.f32 %v115, %v115
    %v118 = vmul.f32 %v116, %v116
    %v119 = vmul.f32 %v112, %v112
    %v120 = vmul.f32 %v114, %v114
    %v121 = vmul.f32 %v77, %v117
    %v122 = vmul.f32 %v78, %v118
    %v123 = vsub.f32 1.0, %v77
    %v124 = vsub.f32 1.0, %v78
    %v125 = vmul.f32 %v123, %v119
    %v126 = vmul.f32 %v124, %v120
    %v127 = vmul.f32 %v121, %v107
    %v128 = vmul.f32 %v122, %v108
    %v129 = vmul.f32 %v125, %v109
    %v130 = vmul.f32 %v126, %v110
    %v131 = vadd.f32 %v127, %v129
    %v132 = vadd.f32 %v128, %v130
    %v133 = vsub.f32 0.0, %v131
    %v134 = vsub.f32 0.0, %v132
    %v135 = vadd.f32 %v121, %v125
    %v136 = vadd.f32 %v122, %v126
    %s137 = sld [smem:[#allocation2]]
    %v138 = vadd.f32 %v133, %v134
    %139 = vadd.xlane.f32.xlu0 %v138
    %v140 = vpop.xlane.xlu0 %139
    %v141 = vrot.slane %v140, 4
    %v142 = vadd.f32 %v140, %v141
    %v143 = vrot.slane %v142, 2
    %v144 = vadd.f32 %v142, %v143
    %v145 = vrot.slane %v144, 1
    %v146 = vadd.f32 %v144, %v145
    %s147 = vtos %v146
    %s148 = sadd.f32 %s137, %s147
    %s149 = scalar_lea.smem [#allocation2], 0
    %150 = sst [smem:[%s149]] %s148
    %s151 = sld [smem:[#allocation2 + $0x1]]
    %v152 = vadd.f32 %v135, %v136
    %153 = vadd.xlane.f32.xlu0 %v152
    %v154 = vpop.xlane.xlu0 %153
    %v155 = vrot.slane %v154, 4
    %v156 = vadd.f32 %v154, %v155
    %v157 = vrot.slane %v156, 2
    %v158 = vadd.f32 %v156, %v157
    %v159 = vrot.slane %v158, 1
    %v160 = vadd.f32 %v158, %v159
    %s161 = vtos %v160
    %s162 = sadd.f32 %s151, %s161
    %s163 = scalar_lea.smem [#allocation2], 1
    %164 = sst [smem:[%s163]] %s162
    // Predicated region
    $region22: #{tpu_custom_call.1} parent=1 // pred_check
      %p165 = pneg %p67
    $region23: #{tpu_custom_call.1} parent=1 // pred_check_branch
      %167 = sbr.rel (%p165) target = $region25
    $region24: #{tpu_custom_call.1} parent=1 // pred_region
      %s168 = sld [smem:[#allocation2]]
      %v169 = vstv %s168
      %170 = vst [vmem:[#allocation8] sm:$0xff] %v169
      %s171 = sld [smem:[#allocation2 + $0x1]]
      %v172 = vstv %s171
      %173 = vst [vmem:[#allocation9] sm:$0xff] %v172
    $region25: #{tpu_custom_call.1} parent=1 // pred_fallthru
      _
    // Predicated region
    $region26: #{tpu_custom_call.1} parent=1 // pred_check
      _
    $region27: #{tpu_custom_call.1} parent=1 // pred_check_branch
      %175 = sbr.rel (0) target = $region29
    $region28: #{tpu_custom_call.1} parent=1 // pred_region
      %177 = vsyncadd [#allocation5], 0
      %s179 = sshll.u32 [#allocation8], 4
      %s180 = int_to_ptr.vmem [resolvable:$true] %s179
      %s181 = sshll.u32 %s2, 4
      %s182 = int_to_ptr.hbm [resolvable:$true] %s181
      %184 = dma.vmem_to_hbm [thread:$0]  %s180, 128, %s182, [#allocation5]
    $region29: #{tpu_custom_call.1} parent=1 // pred_fallthru
      _
    // Predicated region
    $region30: #{tpu_custom_call.1} parent=1 // pred_check
      _
    $region31: #{tpu_custom_call.1} parent=1 // pred_check_branch
      %186 = sbr.rel (0) target = $region33
    $region32: #{tpu_custom_call.1} parent=1 // pred_region
      %188 = vsyncadd [#allocation10], 0
      %s190 = sshll.u32 [#allocation9], 4
      %s191 = int_to_ptr.vmem [resolvable:$true] %s190
      %s192 = sshll.u32 %s3, 4
      %s193 = int_to_ptr.hbm [resolvable:$true] %s192
      %195 = dma.vmem_to_hbm [thread:$0]  %s191, 128, %s193, [#allocation10]
    $region33: #{tpu_custom_call.1} parent=1 // pred_fallthru
      _
    // Predicated region
    $region34: #{tpu_custom_call.1} parent=1 // pred_check
      _
    $region35: #{tpu_custom_call.1} parent=1 // pred_check_branch
      %197 = sbr.rel (0) target = $region37
    $region36: #{tpu_custom_call.1} parent=1 // pred_region
      %199 = dma.done [#allocation5], 128
    $region37: #{tpu_custom_call.1} parent=1 // pred_fallthru
      _
    // Predicated region
    $region38: #{tpu_custom_call.1} parent=1 // pred_check
      _
    $region39: #{tpu_custom_call.1} parent=1 // pred_check_branch
      %201 = sbr.rel (0) target = $region41
    $region40: #{tpu_custom_call.1} parent=1 // pred_region
      %203 = dma.done [#allocation10], 128
    $region41: #{tpu_custom_call.1} parent=1 // pred_fallthru
      _
    %204 = vsyncpa [#allocation4], 1
    %205 = vsyncpa [#allocation7], 1
    %206 = vsyncpa [#allocation5], 1
    %207 = vsyncpa [#allocation10], 1

</llo_original>
